<compile_context>
chip_gen: v6e
topology: v6e:2x2x1
jax: 0.10.0
libtpu: 0.0.40
codegen_flags: <defaults>
</compile_context>

<pallas_src>
import jax
import jax.numpy as jnp
from jax.experimental import pallas as pl
from jax.experimental.pallas import tpu as pltpu


# ----------------------------------------------------------------------------
# Kernels
# ----------------------------------------------------------------------------
def _layernorm_kernel(x_ref, g_ref, b_ref, o_ref):
    """Row-wise LayerNorm; feature dim fully inside the block (lane axis)."""
    x = x_ref[...].astype(jnp.float32)                 # (tm, d)
    d = x.shape[-1]
    mean = jnp.mean(x, axis=-1, keepdims=True)
    c = x - mean
    var = jnp.sum(c * c, axis=-1, keepdims=True) * (1.0 / (d - 1))  # unbiased
    scale = g_ref[...] * jax.lax.rsqrt(var)            # EUP rsqrt; fold gain/std
    o_ref[...] = (scale * c + b_ref[...]).astype(o_ref.dtype)


def _make_packed_layernorm_kernel(d):
    """LayerNorm where k = 128 // d original rows are packed per lane-row.

    Per-group (contiguous d-column) sums are computed with a tiny (dp, dp)
    block-diagonal group-sum matmul on the MXU, so the VMEM block and the
    stores stay 128-lane dense (no masked vst.msk, no in-kernel lane reshape).
    """
    inv_d = 1.0 / d
    inv_dm1 = 1.0 / (d - 1)

    def kernel(x_ref, g_ref, b_ref, o_ref):
        x = x_ref[...].astype(jnp.float32)             # (tm, k*d)
        dp = x.shape[-1]
        gi = jax.lax.broadcasted_iota(jnp.int32, (dp, dp), 0) // d
        gj = jax.lax.broadcasted_iota(jnp.int32, (dp, dp), 1) // d
        seg = (gi == gj).astype(jnp.float32)           # block-diag group-sum mat
        mean = jnp.dot(x, seg, preferred_element_type=jnp.float32,
                       precision=jax.lax.Precision.HIGHEST) * inv_d
        c = x - mean
        var = jnp.dot(c * c, seg, preferred_element_type=jnp.float32,
                      precision=jax.lax.Precision.HIGHEST) * inv_dm1
        scale = g_ref[...] * jax.lax.rsqrt(var)
        o_ref[...] = (scale * c + b_ref[...]).astype(o_ref.dtype)

    return kernel


# ----------------------------------------------------------------------------
# Tiling / VMEM heuristics (generation-aware, with safe fallbacks)
# ----------------------------------------------------------------------------
def _round_up(v, a):
    return ((v + a - 1) // a) * a


def _tpu_info():
    """Returns (VMEM capacity bytes, has-two-TensorCores) with safe fallbacks."""
    vmem_cap = 64 * 1024 * 1024                 # conservative default (v7x)
    try:
        vmem_cap = int(pltpu.get_tpu_info().vmem_capacity_bytes)
    except Exception:
        pass
    two_cores = False
    try:
        kind = jax.devices()[0].device_kind.lower()
        two_cores = ("v7" in kind) or ("tpu7" in kind)
    except Exception:
        pass
    return vmem_cap, two_cores


def _pick_row_tile(m, d, dtype, two_cores):
    """Rows per grid step: VMEM-derived, 16-row aligned, generation-aware."""
    bpe = jnp.dtype(dtype).itemsize
    # Per-step footprint target (~8 MiB): double-buffered in + out blocks in
    # the I/O dtype plus ~3 f32 temporaries inside the body.
    target = 8 * 1024 * 1024
    denom = d * (4 * bpe + 12)
    tm = max(16, (target // denom) // 16 * 16)
    if tm >= m:
        tm = m                                  # full-extent row block (legal)
    if two_cores and m > 16:
        steps = pl.cdiv(m, tm)
        if steps == 1:
            tm = max(16, _round_up(pl.cdiv(m, 2), 16))        # work for both TCs
        elif steps % 2 == 1:
            cand = max(16, _round_up(pl.cdiv(m, steps + 1), 16))
            if pl.cdiv(m, cand) % 2 == 0:
                tm = cand                                      # even step count
    return int(tm)


def _vmem_limit(est_bytes, vmem_cap):
    ceiling = (40 << 20) if vmem_cap >= (100 << 20) else (30 << 20)
    return int(min(ceiling, max(16 << 20, est_bytes)))


# ----------------------------------------------------------------------------
# Wrapper
# ----------------------------------------------------------------------------
def layer_norm(x, gain, bias, *, row_tile=None):
    """Spec'd LayerNorm over the last axis of x (arbitrary leading dims)."""
    orig_shape = x.shape
    d = int(orig_shape[-1])
    m = 1
    for s in orig_shape[:-1]:
        m *= int(s)
    dtype = x.dtype

    # Lane packing for small D: pack k = 128 // D consecutive rows into one
    # 128-lane row so stores are unmasked / lane-dense.
    k = 1
    if 1 < d < 128 and 128 % d == 0 and m % (128 // d) == 0:
        k = 128 // d
    dp = k * d
    mp = m // k

    x2 = x.reshape(mp, dp)
    gain1 = jnp.reshape(gain, (d,)).astype(jnp.float32)
    bias1 = jnp.reshape(bias, (d,)).astype(jnp.float32)
    if k > 1:
        g2 = jnp.tile(gain1, k).reshape(1, dp)
        b2 = jnp.tile(bias1, k).reshape(1, dp)
        kernel = _make_packed_layernorm_kernel(d)
    else:
        g2 = gain1.reshape(1, dp)
        b2 = bias1.reshape(1, dp)
        kernel = _layernorm_kernel

    vmem_cap, two_cores = _tpu_info()
    tm = int(row_tile) if row_tile is not None else _pick_row_tile(
        mp, dp, dtype, two_cores)
    grid = (pl.cdiv(mp, tm),)                   # ragged last block is masked

    bpe = jnp.dtype(dtype).itemsize
    est = (2 * 2 * tm * dp * bpe                # double-buffered in + out blocks
           + 4 * tm * dp * 4                    # f32 temporaries in the body
           + 2 * dp * dp * 4                    # group-sum matrix (packed path)
           + (2 << 20))                         # headroom

    out = pl.pallas_call(
        kernel,
        out_shape=jax.ShapeDtypeStruct((mp, dp), dtype),
        grid_spec=pltpu.PrefetchScalarGridSpec(
            num_scalar_prefetch=0,
            grid=grid,
            in_specs=[
                pl.BlockSpec((tm, dp), lambda i: (i, 0)),
                # gain / bias: constant index_map -> Pallas skips re-fetches.
                pl.BlockSpec((1, dp), lambda i: (0, 0)),
                pl.BlockSpec((1, dp), lambda i: (0, 0)),
            ],
            out_specs=pl.BlockSpec((tm, dp), lambda i: (i, 0)),
        ),
        compiler_params=pltpu.CompilerParams(
            dimension_semantics=("parallel",),
            vmem_limit_bytes=_vmem_limit(est, vmem_cap),
        ),
    )(x2, g2, b2)
    return out.reshape(orig_shape)


def layer_norm_ref(x, gain, bias):
    d = x.shape[-1]
    mean = jnp.mean(x, axis=-1, keepdims=True)
    std = jnp.sqrt(jnp.sum((x - mean) ** 2, axis=-1, keepdims=True) / (d - 1))
    return gain / std * (x - mean) + bias


if __name__ == "__main__":
    key = jax.random.PRNGKey(0)
    keys = jax.random.split(key, 8)

    # ---- 1) lane-dense f32, D = 128 ----------------------------------------
    x = jax.random.normal(keys[0], (4, 64, 128), jnp.float32)
    gain = 1.0 + 0.1 * jax.random.normal(keys[1], (128,), jnp.float32)
    bias = 0.1 * jax.random.normal(keys[2], (128,), jnp.float32)
    out = jax.block_until_ready(layer_norm(x, gain, bias))
    ref = layer_norm_ref(x, gain, bias)
    assert out.shape == x.shape
    assert jnp.allclose(out, ref, atol=1e-4, rtol=1e-4), "LayerNorm D=128 mismatch"

    # ---- 2) small D = 32 -> packed to 128 lanes (4 rows per packed row) ----
    xs = jax.random.normal(keys[3], (2, 8, 32), jnp.float32)
    gs = 1.0 + 0.1 * jax.random.normal(keys[4], (32,), jnp.float32)
    bs = 0.1 * jax.random.normal(keys[5], (32,), jnp.float32)
    outs = jax.block_until_ready(layer_norm(xs, gs, bs))
    refs = layer_norm_ref(xs, gs, bs)
    assert jnp.allclose(outs, refs, atol=2e-4, rtol=2e-4), "LayerNorm D=32 mismatch"

    # ---- 3) ragged row count with a forced tile -> exercises the cdiv grid --
    xr = jax.random.normal(keys[6], (3, 40, 128), jnp.float32)   # m = 120, tm = 48
    outr = jax.block_until_ready(layer_norm(xr, gain, bias, row_tile=48))
    refr = layer_norm_ref(xr, gain, bias)
    assert jnp.allclose(outr, refr, atol=1e-4, rtol=1e-4), "LayerNorm ragged mismatch"

    # ---- 4) bf16 I/O (math still runs in f32 inside the kernel) ------------
    xb = jax.random.normal(keys[7], (2, 64, 128), jnp.float32).astype(jnp.bfloat16)
    outb = jax.block_until_ready(layer_norm(xb, gain, bias))
    refb = layer_norm_ref(xb.astype(jnp.float32), gain, bias)
    assert outb.dtype == jnp.bfloat16
    assert jnp.allclose(outb.astype(jnp.float32), refb, atol=5e-2, rtol=5e-2), \
        "LayerNorm bf16 mismatch"

    print("KERNEL_OK")
</pallas_src>

<mosaic_0001>
module attributes {stable_mosaic.version = 11 : i64} {
  func.func @_layernorm_kernel(%arg0: i32, %arg1: memref<256x128xf32, #tpu.memory_space<vmem>>, %arg2: memref<1x128xf32, #tpu.memory_space<vmem>>, %arg3: memref<1x128xf32, #tpu.memory_space<vmem>>, %arg4: memref<256x128xf32, #tpu.memory_space<vmem>>) attributes {dimension_semantics = [#tpu.dimension_semantics<parallel>], iteration_bounds = array<i64: 1>, scalar_prefetch = 0 : i64, scratch_operands = 0 : i64, tpu.core_type = #tpu.core_type<tc>, window_params = [{transform_indices = @transform_0, window_bounds = array<i64: 256, 128>}, {pipeline_mode = #tpu.pipeline_mode<synchronous>, transform_indices = @transform_1, window_bounds = array<i64: 1, 128>}, {pipeline_mode = #tpu.pipeline_mode<synchronous>, transform_indices = @transform_2, window_bounds = array<i64: 1, 128>}, {transform_indices = @transform_3, window_bounds = array<i64: 256, 128>}]} {
    %c0 = arith.constant 0 : index
    %c0_0 = arith.constant 0 : index
    %0 = vector.load %arg1[%c0, %c0_0] : memref<256x128xf32, #tpu.memory_space<vmem>>, vector<256x128xf32>
    %cst = arith.constant dense<0.000000e+00> : vector<256xf32>
    %1 = vector.multi_reduction <add>, %0, %cst [1] : vector<256x128xf32> to vector<256xf32>
    %2 = vector.shape_cast %1 : vector<256xf32> to vector<256x1xf32>
    %cst_1 = arith.constant 1.280000e+02 : f32
    %3 = vector.broadcast %cst_1 : f32 to vector<256x1xf32>
    %4 = arith.divf %2, %3 : vector<256x1xf32>
    %5 = vector.broadcast %4 : vector<256x1xf32> to vector<256x128xf32>
    %6 = arith.subf %0, %5 : vector<256x128xf32>
    %7 = arith.mulf %6, %6 : vector<256x128xf32>
    %cst_2 = arith.constant dense<0.000000e+00> : vector<256xf32>
    %8 = vector.multi_reduction <add>, %7, %cst_2 [1] : vector<256x128xf32> to vector<256xf32>
    %9 = vector.shape_cast %8 : vector<256xf32> to vector<256x1xf32>
    %cst_3 = arith.constant 0.00787401571 : f32
    %10 = vector.broadcast %cst_3 : f32 to vector<256x1xf32>
    %11 = arith.mulf %9, %10 : vector<256x1xf32>
    %c0_4 = arith.constant 0 : index
    %c0_5 = arith.constant 0 : index
    %12 = vector.load %arg2[%c0_4, %c0_5] : memref<1x128xf32, #tpu.memory_space<vmem>>, vector<1x128xf32>
    %13 = math.rsqrt %11 : vector<256x1xf32>
    %14 = vector.broadcast %12 : vector<1x128xf32> to vector<256x128xf32>
    %15 = vector.broadcast %13 : vector<256x1xf32> to vector<256x128xf32>
    %16 = arith.mulf %14, %15 : vector<256x128xf32>
    %17 = arith.mulf %16, %6 : vector<256x128xf32>
    %c0_6 = arith.constant 0 : index
    %c0_7 = arith.constant 0 : index
    %18 = vector.load %arg3[%c0_6, %c0_7] : memref<1x128xf32, #tpu.memory_space<vmem>>, vector<1x128xf32>
    %19 = vector.broadcast %18 : vector<1x128xf32> to vector<256x128xf32>
    %20 = arith.addf %17, %19 : vector<256x128xf32>
    %c0_8 = arith.constant 0 : index
    %c0_9 = arith.constant 0 : index
    %21 = vector.load %arg4[%c0_8, %c0_9] : memref<256x128xf32, #tpu.memory_space<vmem>>, vector<256x128xf32>
    tpu.vector_store %arg4[%c0_8, %c0_9], %20 {strides = array<i32>} : memref<256x128xf32, #tpu.memory_space<vmem>>, vector<256x128xf32>,
    return
  }
  func.func @transform_0(%arg0: i32) -> (i32, i32) {
    %c0_i32 = arith.constant 0 : i32
    %c0_i32_0 = arith.constant 0 : i32
    return %arg0, %c0_i32 : i32, i32
  }
  func.func @transform_1(%arg0: i32) -> (i32, i32) {
    %c0_i32 = arith.constant 0 : i32
    %c0_i32_0 = arith.constant 0 : i32
    %c0_i32_1 = arith.constant 0 : i32
    return %c0_i32, %c0_i32_0 : i32, i32
  }
  func.func @transform_2(%arg0: i32) -> (i32, i32) {
    %c0_i32 = arith.constant 0 : i32
    %c0_i32_0 = arith.constant 0 : i32
    %c0_i32_1 = arith.constant 0 : i32
    return %c0_i32, %c0_i32_0 : i32, i32
  }
  func.func @transform_3(%arg0: i32) -> (i32, i32) {
    %c0_i32 = arith.constant 0 : i32
    %c0_i32_0 = arith.constant 0 : i32
    return %arg0, %c0_i32 : i32, i32
  }
}

</mosaic_0001>

<llo_original>
// kernel: tpu_custom_call.1
$region0: #{tpu_custom_call.1}
  #allocation0 [shape = 'u32[]', space=smem, size = 0x4, offset = 0x4, fixed_abs, tag = 'smem constant byte address 0x4 - core index']
  #allocation1 [shape = 'u32[144,128]{1,0:T(1,128)}', space=vmem, size = 0x12000, scoped, tag = 'internal scratch']
  %s0 = inlined_call_operand.hbm [shape: f32[256,128], index: 0, kind: input, shape index: {}]
  %s1 = inlined_call_operand.vmem [shape: f32[1,128], index: 1, kind: input, shape index: {}]
  %s2 = inlined_call_operand.vmem [shape: f32[1,128], index: 2, kind: input, shape index: {}]
  %s3 = inlined_call_operand.hbm [shape: f32[256,128], index: 3, kind: output, shape index: {}]
  %s4 = sld [smem:[#allocation0]]
  $region26: #{tpu_custom_call.1} parent=0
    _
  %s6 = ssub.s32 1, %s4
  %s7 = scalar_select 0, %s6, %s4
  $region1: #{tpu_custom_call.1} parent=0
    #allocation2 [shape = 'u8[131072]{0}', space=vmem, size = 0x20000, scoped, tag = 'input window, operand 0, single buffered']
    #allocation3 [shape = 's32[1]{0}', space=sflag, size = 0x4, scoped, tag = 'scoped memory for tpu_custom_call.1']
    #allocation4 [shape = 's32[1]{0}', space=sflag, size = 0x4, scoped, tag = 'scoped memory for tpu_custom_call.1']
    #allocation5 [shape = 'u8[131072]{0}', space=vmem, size = 0x20000, scoped, tag = 'output window, operand 0, single buffered']
    %8 = vsyncpa [#allocation3], 0
    %9 = vsyncpa [#allocation4], 0
    // Predicated region
    $region2: #{tpu_custom_call.1} parent=1 // pred_check
      _
    $region3: #{tpu_custom_call.1} parent=1 // pred_check_branch
      %11 = sbr.rel (0) target = $region5
    $region4: #{tpu_custom_call.1} parent=1 // pred_region
      %s13 = ssub.s32 4096, 4096
      %14 = vsyncadd [#allocation3], %s13
      %s15 = sshll.u32 [#allocation2], 4
      %s16 = int_to_ptr.vmem [resolvable:$true] %s15
      %21 = dma.hbm_to_vmem [thread:$0]  %s0, 4096, %s16, [#allocation3], 128, 128, 8
    $region5: #{tpu_custom_call.1} parent=1 // pred_fallthru
      _
    // Predicated region
    $region6: #{tpu_custom_call.1} parent=1 // pred_check
      _
    $region7: #{tpu_custom_call.1} parent=1 // pred_check_branch
      %23 = sbr.rel (0) target = $region9
    $region8: #{tpu_custom_call.1} parent=1 // pred_region
      _
    $region9: #{tpu_custom_call.1} parent=1 // pred_fallthru
      _
    // Predicated region
    $region10: #{tpu_custom_call.1} parent=1 // pred_check
      _
    $region11: #{tpu_custom_call.1} parent=1 // pred_check_branch
      %25 = sbr.rel (0) target = $region13
    $region12: #{tpu_custom_call.1} parent=1 // pred_region
      _
    $region13: #{tpu_custom_call.1} parent=1 // pred_fallthru
      _
    // Predicated region
    $region14: #{tpu_custom_call.1} parent=1 // pred_check
      _
    $region15: #{tpu_custom_call.1} parent=1 // pred_check_branch
      %27 = sbr.rel (0) target = $region17
    $region16: #{tpu_custom_call.1} parent=1 // pred_region
      %28 = dma.done [#allocation3], 4096
    $region17: #{tpu_custom_call.1} parent=1 // pred_fallthru
      _
    %v29 = vld [vmem:[#allocation2] sm:$0xff]
    %v30 = vld [vmem:[#allocation2 + $0x8] sm:$0xff]
    %v31 = vld [vmem:[#allocation2 + $0x10] sm:$0xff]
    %v32 = vld [vmem:[#allocation2 + $0x18] sm:$0xff]
    %v33 = vld [vmem:[#allocation2 + $0x20] sm:$0xff]
    %v34 = vld [vmem:[#allocation2 + $0x28] sm:$0xff]
    %v35 = vld [vmem:[#allocation2 + $0x30] sm:$0xff]
    %v36 = vld [vmem:[#allocation2 + $0x38] sm:$0xff]
    %v37 = vld [vmem:[#allocation2 + $0x40] sm:$0xff]
    %v38 = vld [vmem:[#allocation2 + $0x48] sm:$0xff]
    %v39 = vld [vmem:[#allocation2 + $0x50] sm:$0xff]
    %v40 = vld [vmem:[#allocation2 + $0x58] sm:$0xff]
    %v41 = vld [vmem:[#allocation2 + $0x60] sm:$0xff]
    %v42 = vld [vmem:[#allocation2 + $0x68] sm:$0xff]
    %v43 = vld [vmem:[#allocation2 + $0x70] sm:$0xff]
    %v44 = vld [vmem:[#allocation2 + $0x78] sm:$0xff]
    %v45 = vld [vmem:[#allocation2 + $0x80] sm:$0xff]
    %v46 = vld [vmem:[#allocation2 + $0x88] sm:$0xff]
    %v47 = vld [vmem:[#allocation2 + $0x90] sm:$0xff]
    %v48 = vld [vmem:[#allocation2 + $0x98] sm:$0xff]
    %v49 = vld [vmem:[#allocation2 + $0xa0] sm:$0xff]
    %v50 = vld [vmem:[#allocation2 + $0xa8] sm:$0xff]
    %v51 = vld [vmem:[#allocation2 + $0xb0] sm:$0xff]
    %v52 = vld [vmem:[#allocation2 + $0xb8] sm:$0xff]
    %v53 = vld [vmem:[#allocation2 + $0xc0] sm:$0xff]
    %v54 = vld [vmem:[#allocation2 + $0xc8] sm:$0xff]
    %v55 = vld [vmem:[#allocation2 + $0xd0] sm:$0xff]
    %v56 = vld [vmem:[#allocation2 + $0xd8] sm:$0xff]
    %v57 = vld [vmem:[#allocation2 + $0xe0] sm:$0xff]
    %v58 = vld [vmem:[#allocation2 + $0xe8] sm:$0xff]
    %v59 = vld [vmem:[#allocation2 + $0xf0] sm:$0xff]
    %v60 = vld [vmem:[#allocation2 + $0xf8] sm:$0xff]
    %61 = vadd.xlane.f32.xlu0 %v29
    %v62 = vpop.xlane.xlu0 %61
    %63 = vadd.xlane.f32.xlu0 %v30
    %v64 = vpop.xlane.xlu0 %63
    %65 = vadd.xlane.f32.xlu0 %v31
    %v66 = vpop.xlane.xlu0 %65
    %67 = vadd.xlane.f32.xlu0 %v32
    %v68 = vpop.xlane.xlu0 %67
    %69 = vadd.xlane.f32.xlu0 %v33
    %v70 = vpop.xlane.xlu0 %69
    %71 = vadd.xlane.f32.xlu0 %v34
    %v72 = vpop.xlane.xlu0 %71
    %73 = vadd.xlane.f32.xlu0 %v35
    %v74 = vpop.xlane.xlu0 %73
    %75 = vadd.xlane.f32.xlu0 %v36
    %v76 = vpop.xlane.xlu0 %75
    %77 = vadd.xlane.f32.xlu0 %v37
    %v78 = vpop.xlane.xlu0 %77
    %79 = vadd.xlane.f32.xlu0 %v38
    %v80 = vpop.xlane.xlu0 %79
    %81 = vadd.xlane.f32.xlu0 %v39
    %v82 = vpop.xlane.xlu0 %81
    %83 = vadd.xlane.f32.xlu0 %v40
    %v84 = vpop.xlane.xlu0 %83
    %85 = vadd.xlane.f32.xlu0 %v41
    %v86 = vpop.xlane.xlu0 %85
    %87 = vadd.xlane.f32.xlu0 %v42
    %v88 = vpop.xlane.xlu0 %87
    %89 = vadd.xlane.f32.xlu0 %v43
    %v90 = vpop.xlane.xlu0 %89
    %91 = vadd.xlane.f32.xlu0 %v44
    %v92 = vpop.xlane.xlu0 %91
    %93 = vadd.xlane.f32.xlu0 %v45
    %v94 = vpop.xlane.xlu0 %93
    %95 = vadd.xlane.f32.xlu0 %v46
    %v96 = vpop.xlane.xlu0 %95
    %97 = vadd.xlane.f32.xlu0 %v47
    %v98 = vpop.xlane.xlu0 %97
    %99 = vadd.xlane.f32.xlu0 %v48
    %v100 = vpop.xlane.xlu0 %99
    %101 = vadd.xlane.f32.xlu0 %v49
    %v102 = vpop.xlane.xlu0 %101
    %103 = vadd.xlane.f32.xlu0 %v50
    %v104 = vpop.xlane.xlu0 %103
    %105 = vadd.xlane.f32.xlu0 %v51
    %v106 = vpop.xlane.xlu0 %105
    %107 = vadd.xlane.f32.xlu0 %v52
    %v108 = vpop.xlane.xlu0 %107
    %109 = vadd.xlane.f32.xlu0 %v53
    %v110 = vpop.xlane.xlu0 %109
    %111 = vadd.xlane.f32.xlu0 %v54
    %v112 = vpop.xlane.xlu0 %111
    %113 = vadd.xlane.f32.xlu0 %v55
    %v114 = vpop.xlane.xlu0 %113
    %115 = vadd.xlane.f32.xlu0 %v56
    %v116 = vpop.xlane.xlu0 %115
    %117 = vadd.xlane.f32.xlu0 %v57
    %v118 = vpop.xlane.xlu0 %117
    %119 = vadd.xlane.f32.xlu0 %v58
    %v120 = vpop.xlane.xlu0 %119
    %121 = vadd.xlane.f32.xlu0 %v59
    %v122 = vpop.xlane.xlu0 %121
    %123 = vadd.xlane.f32.xlu0 %v60
    %v124 = vpop.xlane.xlu0 %123
    %v125 = vrcp.pop 128.0
    %v126 = vmul.f32 %v62, %v125
    %v127 = vmul.f32 %v64, %v125
    %v128 = vmul.f32 %v66, %v125
    %v129 = vmul.f32 %v68, %v125
    %v130 = vmul.f32 %v70, %v125
    %v131 = vmul.f32 %v72, %v125
    %v132 = vmul.f32 %v74, %v125
    %v133 = vmul.f32 %v76, %v125
    %v134 = vmul.f32 %v78, %v125
    %v135 = vmul.f32 %v80, %v125
    %v136 = vmul.f32 %v82, %v125
    %v137 = vmul.f32 %v84, %v125
    %v138 = vmul.f32 %v86, %v125
    %v139 = vmul.f32 %v88, %v125
    %v140 = vmul.f32 %v90, %v125
    %v141 = vmul.f32 %v92, %v125
    %v142 = vmul.f32 %v94, %v125
    %v143 = vmul.f32 %v96, %v125
    %v144 = vmul.f32 %v98, %v125
    %v145 = vmul.f32 %v100, %v125
    %v146 = vmul.f32 %v102, %v125
    %v147 = vmul.f32 %v104, %v125
    %v148 = vmul.f32 %v106, %v125
    %v149 = vmul.f32 %v108, %v125
    %v150 = vmul.f32 %v110, %v125
    %v151 = vmul.f32 %v112, %v125
    %v152 = vmul.f32 %v114, %v125
    %v153 = vmul.f32 %v116, %v125
    %v154 = vmul.f32 %v118, %v125
    %v155 = vmul.f32 %v120, %v125
    %v156 = vmul.f32 %v122, %v125
    %v157 = vmul.f32 %v124, %v125
    %v158 = vsub.f32 %v29, %v126
    %v159 = vsub.f32 %v30, %v127
    %v160 = vsub.f32 %v31, %v128
    %v161 = vsub.f32 %v32, %v129
    %v162 = vsub.f32 %v33, %v130
    %v163 = vsub.f32 %v34, %v131
    %v164 = vsub.f32 %v35, %v132
    %v165 = vsub.f32 %v36, %v133
    %v166 = vsub.f32 %v37, %v134
    %v167 = vsub.f32 %v38, %v135
    %v168 = vsub.f32 %v39, %v136
    %v169 = vsub.f32 %v40, %v137
    %v170 = vsub.f32 %v41, %v138
    %v171 = vsub.f32 %v42, %v139
    %v172 = vsub.f32 %v43, %v140
    %v173 = vsub.f32 %v44, %v141
    %v174 = vsub.f32 %v45, %v142
    %v175 = vsub.f32 %v46, %v143
    %v176 = vsub.f32 %v47, %v144
    %v177 = vsub.f32 %v48, %v145
    %v178 = vsub.f32 %v49, %v146
    %v179 = vsub.f32 %v50, %v147
    %v180 = vsub.f32 %v51, %v148
    %v181 = vsub.f32 %v52, %v149
    %v182 = vsub.f32 %v53, %v150
    %v183 = vsub.f32 %v54, %v151
    %v184 = vsub.f32 %v55, %v152
    %v185 = vsub.f32 %v56, %v153
    %v186 = vsub.f32 %v57, %v154
    %v187 = vsub.f32 %v58, %v155
    %v188 = vsub.f32 %v59, %v156
    %v189 = vsub.f32 %v60, %v157
    %v190 = vmul.f32 %v158, %v158
    %v191 = vmul.f32 %v159, %v159
    %v192 = vmul.f32 %v160, %v160
    %v193 = vmul.f32 %v161, %v161
    %v194 = vmul.f32 %v162, %v162
    %v195 = vmul.f32 %v163, %v163
    %v196 = vmul.f32 %v164, %v164
    %v197 = vmul.f32 %v165, %v165
    %v198 = vmul.f32 %v166, %v166
    %v199 = vmul.f32 %v167, %v167
    %v200 = vmul.f32 %v168, %v168
    %v201 = vmul.f32 %v169, %v169
    %v202 = vmul.f32 %v170, %v170
    %v203 = vmul.f32 %v171, %v171
    %v204 = vmul.f32 %v172, %v172
    %v205 = vmul.f32 %v173, %v173
    %v206 = vmul.f32 %v174, %v174
    %v207 = vmul.f32 %v175, %v175
    %v208 = vmul.f32 %v176, %v176
    %v209 = vmul.f32 %v177, %v177
    %v210 = vmul.f32 %v178, %v178
    %v211 = vmul.f32 %v179, %v179
    %v212 = vmul.f32 %v180, %v180
    %v213 = vmul.f32 %v181, %v181
    %v214 = vmul.f32 %v182, %v182
    %v215 = vmul.f32 %v183, %v183
    %v216 = vmul.f32 %v184, %v184
    %v217 = vmul.f32 %v185, %v185
    %v218 = vmul.f32 %v186, %v186
    %v219 = vmul.f32 %v187, %v187
    %v220 = vmul.f32 %v188, %v188
    %v221 = vmul.f32 %v189, %v189
    %222 = vadd.xlane.f32.xlu0 %v190
    %v223 = vpop.xlane.xlu0 %222
    %224 = vadd.xlane.f32.xlu0 %v191
    %v225 = vpop.xlane.xlu0 %224
    %226 = vadd.xlane.f32.xlu0 %v192
    %v227 = vpop.xlane.xlu0 %226
    %228 = vadd.xlane.f32.xlu0 %v193
    %v229 = vpop.xlane.xlu0 %228
    %230 = vadd.xlane.f32.xlu0 %v194
    %v231 = vpop.xlane.xlu0 %230
    %232 = vadd.xlane.f32.xlu0 %v195
    %v233 = vpop.xlane.xlu0 %232
    %234 = vadd.xlane.f32.xlu0 %v196
    %v235 = vpop.xlane.xlu0 %234
    %236 = vadd.xlane.f32.xlu0 %v197
    %v237 = vpop.xlane.xlu0 %236
    %238 = vadd.xlane.f32.xlu0 %v198
    %v239 = vpop.xlane.xlu0 %238
    %240 = vadd.xlane.f32.xlu0 %v199
    %v241 = vpop.xlane.xlu0 %240
    %242 = vadd.xlane.f32.xlu0 %v200
    %v243 = vpop.xlane.xlu0 %242
    %244 = vadd.xlane.f32.xlu0 %v201
    %v245 = vpop.xlane.xlu0 %244
    %246 = vadd.xlane.f32.xlu0 %v202
    %v247 = vpop.xlane.xlu0 %246
    %248 = vadd.xlane.f32.xlu0 %v203
    %v249 = vpop.xlane.xlu0 %248
    %250 = vadd.xlane.f32.xlu0 %v204
    %v251 = vpop.xlane.xlu0 %250
    %252 = vadd.xlane.f32.xlu0 %v205
    %v253 = vpop.xlane.xlu0 %252
    %254 = vadd.xlane.f32.xlu0 %v206
    %v255 = vpop.xlane.xlu0 %254
    %256 = vadd.xlane.f32.xlu0 %v207
    %v257 = vpop.xlane.xlu0 %256
    %258 = vadd.xlane.f32.xlu0 %v208
    %v259 = vpop.xlane.xlu0 %258
    %260 = vadd.xlane.f32.xlu0 %v209
    %v261 = vpop.xlane.xlu0 %260
    %262 = vadd.xlane.f32.xlu0 %v210
    %v263 = vpop.xlane.xlu0 %262
    %264 = vadd.xlane.f32.xlu0 %v211
    %v265 = vpop.xlane.xlu0 %264
    %266 = vadd.xlane.f32.xlu0 %v212
    %v267 = vpop.xlane.xlu0 %266
    %268 = vadd.xlane.f32.xlu0 %v213
    %v269 = vpop.xlane.xlu0 %268
    %270 = vadd.xlane.f32.xlu0 %v214
    %v271 = vpop.xlane.xlu0 %270
    %272 = vadd.xlane.f32.xlu0 %v215
    %v273 = vpop.xlane.xlu0 %272
    %274 = vadd.xlane.f32.xlu0 %v216
    %v275 = vpop.xlane.xlu0 %274
    %276 = vadd.xlane.f32.xlu0 %v217
    %v277 = vpop.xlane.xlu0 %276
    %278 = vadd.xlane.f32.xlu0 %v218
    %v279 = vpop.xlane.xlu0 %278
    %280 = vadd.xlane.f32.xlu0 %v219
    %v281 = vpop.xlane.xlu0 %280
    %282 = vadd.xlane.f32.xlu0 %v220
    %v283 = vpop.xlane.xlu0 %282
    %284 = vadd.xlane.f32.xlu0 %v221
    %v285 = vpop.xlane.xlu0 %284
    %v286 = vmul.f32 %v223, 0.007874016
    %v287 = vmul.f32 %v225, 0.007874016
    %v288 = vmul.f32 %v227, 0.007874016
    %v289 = vmul.f32 %v229, 0.007874016
    %v290 = vmul.f32 %v231, 0.007874016
    %v291 = vmul.f32 %v233, 0.007874016
    %v292 = vmul.f32 %v235, 0.007874016
    %v293 = vmul.f32 %v237, 0.007874016
    %v294 = vmul.f32 %v239, 0.007874016
    %v295 = vmul.f32 %v241, 0.007874016
    %v296 = vmul.f32 %v243, 0.007874016
    %v297 = vmul.f32 %v245, 0.007874016
    %v298 = vmul.f32 %v247, 0.007874016
    %v299 = vmul.f32 %v249, 0.007874016
    %v300 = vmul.f32 %v251, 0.007874016
    %v301 = vmul.f32 %v253, 0.007874016
    %v302 = vmul.f32 %v255, 0.007874016
    %v303 = vmul.f32 %v257, 0.007874016
    %v304 = vmul.f32 %v259, 0.007874016
    %v305 = vmul.f32 %v261, 0.007874016
    %v306 = vmul.f32 %v263, 0.007874016
    %v307 = vmul.f32 %v265, 0.007874016
    %v308 = vmul.f32 %v267, 0.007874016
    %v309 = vmul.f32 %v269, 0.007874016
    %v310 = vmul.f32 %v271, 0.007874016
    %v311 = vmul.f32 %v273, 0.007874016
    %v312 = vmul.f32 %v275, 0.007874016
    %v313 = vmul.f32 %v277, 0.007874016
    %v314 = vmul.f32 %v279, 0.007874016
    %v315 = vmul.f32 %v281, 0.007874016
    %v316 = vmul.f32 %v283, 0.007874016
    %v317 = vmul.f32 %v285, 0.007874016
    %v318 = vld [vmem:[%s1] sm:$0x1]
    %v319 = vrsqrt.pop %v286
    %v320 = vrsqrt.pop %v287
    %v321 = vrsqrt.pop %v288
    %v322 = vrsqrt.pop %v289
    %v323 = vrsqrt.pop %v290
    %v324 = vrsqrt.pop %v291
    %v325 = vrsqrt.pop %v292
    %v326 = vrsqrt.pop %v293
    %v327 = vrsqrt.pop %v294
    %v328 = vrsqrt.pop %v295
    %v329 = vrsqrt.pop %v296
    %v330 = vrsqrt.pop %v297
    %v331 = vrsqrt.pop %v298
    %v332 = vrsqrt.pop %v299
    %v333 = vrsqrt.pop %v300
    %v334 = vrsqrt.pop %v301
    %v335 = vrsqrt.pop %v302
    %v336 = vrsqrt.pop %v303
    %v337 = vrsqrt.pop %v304
    %v338 = vrsqrt.pop %v305
    %v339 = vrsqrt.pop %v306
    %v340 = vrsqrt.pop %v307
    %v341 = vrsqrt.pop %v308
    %v342 = vrsqrt.pop %v309
    %v343 = vrsqrt.pop %v310
    %v344 = vrsqrt.pop %v311
    %v345 = vrsqrt.pop %v312
    %v346 = vrsqrt.pop %v313
    %v347 = vrsqrt.pop %v314
    %v348 = vrsqrt.pop %v315
    %v349 = vrsqrt.pop %v316
    %v350 = vrsqrt.pop %v317
    %v352 = vlaneseq
    %v353 = vshrl.u32 %v352, 7
    %v354 = vsub.s32 0, %v353
    %v355 = vrot.slane %v318, %v354
    %v357 = vmul.f32 %v355, %v319
    %v358 = vmul.f32 %v355, %v320
    %v359 = vmul.f32 %v355, %v321
    %v360 = vmul.f32 %v355, %v322
    %v361 = vmul.f32 %v355, %v323
    %v362 = vmul.f32 %v355, %v324
    %v363 = vmul.f32 %v355, %v325
    %v364 = vmul.f32 %v355, %v326
    %v365 = vmul.f32 %v355, %v327
    %v366 = vmul.f32 %v355, %v328
    %v367 = vmul.f32 %v355, %v329
    %v368 = vmul.f32 %v355, %v330
    %v369 = vmul.f32 %v355, %v331
    %v370 = vmul.f32 %v355, %v332
    %v371 = vmul.f32 %v355, %v333
    %v372 = vmul.f32 %v355, %v334
    %v373 = vmul.f32 %v355, %v335
    %v374 = vmul.f32 %v355, %v336
    %v375 = vmul.f32 %v355, %v337
    %v376 = vmul.f32 %v355, %v338
    %v377 = vmul.f32 %v355, %v339
    %v378 = vmul.f32 %v355, %v340
    %v379 = vmul.f32 %v355, %v341
    %v380 = vmul.f32 %v355, %v342
    %v381 = vmul.f32 %v355, %v343
    %v382 = vmul.f32 %v355, %v344
    %v383 = vmul.f32 %v355, %v345
    %v384 = vmul.f32 %v355, %v346
    %v385 = vmul.f32 %v355, %v347
    %v386 = vmul.f32 %v355, %v348
    %v387 = vmul.f32 %v355, %v349
    %v388 = vmul.f32 %v355, %v350
    %v389 = vmul.f32 %v357, %v158
    %v390 = vmul.f32 %v358, %v159
    %v391 = vmul.f32 %v359, %v160
    %v392 = vmul.f32 %v360, %v161
    %v393 = vmul.f32 %v361, %v162
    %v394 = vmul.f32 %v362, %v163
    %v395 = vmul.f32 %v363, %v164
    %v396 = vmul.f32 %v364, %v165
    %v397 = vmul.f32 %v365, %v166
    %v398 = vmul.f32 %v366, %v167
    %v399 = vmul.f32 %v367, %v168
    %v400 = vmul.f32 %v368, %v169
    %v401 = vmul.f32 %v369, %v170
    %v402 = vmul.f32 %v370, %v171
    %v403 = vmul.f32 %v371, %v172
    %v404 = vmul.f32 %v372, %v173
    %v405 = vmul.f32 %v373, %v174
    %v406 = vmul.f32 %v374, %v175
    %v407 = vmul.f32 %v375, %v176
    %v408 = vmul.f32 %v376, %v177
    %v409 = vmul.f32 %v377, %v178
    %v410 = vmul.f32 %v378, %v179
    %v411 = vmul.f32 %v379, %v180
    %v412 = vmul.f32 %v380, %v181
    %v413 = vmul.f32 %v381, %v182
    %v414 = vmul.f32 %v382, %v183
    %v415 = vmul.f32 %v383, %v184
    %v416 = vmul.f32 %v384, %v185
    %v417 = vmul.f32 %v385, %v186
    %v418 = vmul.f32 %v386, %v187
    %v419 = vmul.f32 %v387, %v188
    %v420 = vmul.f32 %v388, %v189
    %v421 = vld [vmem:[%s2] sm:$0x1]
    %v423 = vlaneseq
    %v424 = vshrl.u32 %v423, 7
    %v425 = vsub.s32 0, %v424
    %v426 = vrot.slane %v421, %v425
    %v428 = vadd.f32 %v389, %v426
    %v429 = vadd.f32 %v390, %v426
    %v430 = vadd.f32 %v391, %v426
    %v431 = vadd.f32 %v392, %v426
    %v432 = vadd.f32 %v393, %v426
    %v433 = vadd.f32 %v394, %v426
    %v434 = vadd.f32 %v395, %v426
    %v435 = vadd.f32 %v396, %v426
    %v436 = vadd.f32 %v397, %v426
    %v437 = vadd.f32 %v398, %v426
    %v438 = vadd.f32 %v399, %v426
    %v439 = vadd.f32 %v400, %v426
    %v440 = vadd.f32 %v401, %v426
    %v441 = vadd.f32 %v402, %v426
    %v442 = vadd.f32 %v403, %v426
    %v443 = vadd.f32 %v404, %v426
    %v444 = vadd.f32 %v405, %v426
    %v445 = vadd.f32 %v406, %v426
    %v446 = vadd.f32 %v407, %v426
    %v447 = vadd.f32 %v408, %v426
    %v448 = vadd.f32 %v409, %v426
    %v449 = vadd.f32 %v410, %v426
    %v450 = vadd.f32 %v411, %v426
    %v451 = vadd.f32 %v412, %v426
    %v452 = vadd.f32 %v413, %v426
    %v453 = vadd.f32 %v414, %v426
    %v454 = vadd.f32 %v415, %v426
    %v455 = vadd.f32 %v416, %v426
    %v456 = vadd.f32 %v417, %v426
    %v457 = vadd.f32 %v418, %v426
    %v458 = vadd.f32 %v419, %v426
    %v459 = vadd.f32 %v420, %v426
    %460 = vst [vmem:[#allocation5] sm:$0xff] %v428
    %461 = vst [vmem:[#allocation5 + $0x8] sm:$0xff] %v429
    %462 = vst [vmem:[#allocation5 + $0x10] sm:$0xff] %v430
    %463 = vst [vmem:[#allocation5 + $0x18] sm:$0xff] %v431
    %464 = vst [vmem:[#allocation5 + $0x20] sm:$0xff] %v432
    %465 = vst [vmem:[#allocation5 + $0x28] sm:$0xff] %v433
    %466 = vst [vmem:[#allocation5 + $0x30] sm:$0xff] %v434
    %467 = vst [vmem:[#allocation5 + $0x38] sm:$0xff] %v435
    %468 = vst [vmem:[#allocation5 + $0x40] sm:$0xff] %v436
    %469 = vst [vmem:[#allocation5 + $0x48] sm:$0xff] %v437
    %470 = vst [vmem:[#allocation5 + $0x50] sm:$0xff] %v438
    %471 = vst [vmem:[#allocation5 + $0x58] sm:$0xff] %v439
    %472 = vst [vmem:[#allocation5 + $0x60] sm:$0xff] %v440
    %473 = vst [vmem:[#allocation5 + $0x68] sm:$0xff] %v441
    %474 = vst [vmem:[#allocation5 + $0x70] sm:$0xff] %v442
    %475 = vst [vmem:[#allocation5 + $0x78] sm:$0xff] %v443
    %476 = vst [vmem:[#allocation5 + $0x80] sm:$0xff] %v444
    %477 = vst [vmem:[#allocation5 + $0x88] sm:$0xff] %v445
    %478 = vst [vmem:[#allocation5 + $0x90] sm:$0xff] %v446
    %479 = vst [vmem:[#allocation5 + $0x98] sm:$0xff] %v447
    %480 = vst [vmem:[#allocation5 + $0xa0] sm:$0xff] %v448
    %481 = vst [vmem:[#allocation5 + $0xa8] sm:$0xff] %v449
    %482 = vst [vmem:[#allocation5 + $0xb0] sm:$0xff] %v450
    %483 = vst [vmem:[#allocation5 + $0xb8] sm:$0xff] %v451
    %484 = vst [vmem:[#allocation5 + $0xc0] sm:$0xff] %v452
    %485 = vst [vmem:[#allocation5 + $0xc8] sm:$0xff] %v453
    %486 = vst [vmem:[#allocation5 + $0xd0] sm:$0xff] %v454
    %487 = vst [vmem:[#allocation5 + $0xd8] sm:$0xff] %v455
    %488 = vst [vmem:[#allocation5 + $0xe0] sm:$0xff] %v456
    %489 = vst [vmem:[#allocation5 + $0xe8] sm:$0xff] %v457
    %490 = vst [vmem:[#allocation5 + $0xf0] sm:$0xff] %v458
    %491 = vst [vmem:[#allocation5 + $0xf8] sm:$0xff] %v459
    // Predicated region
    $region18: #{tpu_custom_call.1} parent=1 // pred_check
      _
    $region19: #{tpu_custom_call.1} parent=1 // pred_check_branch
      %493 = sbr.rel (0) target = $region21
    $region20: #{tpu_custom_call.1} parent=1 // pred_region
      %s495 = ssub.s32 4096, 4096
      %496 = vsyncadd [#allocation4], %s495
      %s497 = sshll.u32 [#allocation5], 4
      %s498 = int_to_ptr.vmem [resolvable:$true] %s497
      %503 = dma.vmem_to_hbm [thread:$0]  %s498, 4096, %s3, [#allocation4], 128, 128, 8
    $region21: #{tpu_custom_call.1} parent=1 // pred_fallthru
      _
    // Predicated region
    $region22: #{tpu_custom_call.1} parent=1 // pred_check
      _
    $region23: #{tpu_custom_call.1} parent=1 // pred_check_branch
      %505 = sbr.rel (0) target = $region25
    $region24: #{tpu_custom_call.1} parent=1 // pred_region
      %506 = dma.done [#allocation4], 4096
    $region25: #{tpu_custom_call.1} parent=1 // pred_fallthru
      _
    %507 = vsyncpa [#allocation3], 1
    %508 = vsyncpa [#allocation4], 1

</llo_original>
